<compile_context>
chip_gen: v7x
topology: tpu7x:2x2x1
jax: 0.10.0
libtpu: 0.0.40
codegen_flags: <defaults>
</compile_context>

<pallas_src>
import jax
import jax.numpy as jnp
from jax.experimental import pallas as pl
from jax.experimental.pallas import tpu as pltpu

CONST_VALUE = 2
_LANES = 128
_BLOCK_BYTES = 2 << 20           # ~2 MiB per block per buffer (x4 pipelined = ~8 MiB)
_SMALL_BYPASS_BYTES = 256 << 10  # below this, plain XLA add beats a custom call


def _add_const_kernel(x_ref, o_ref):
    # Cast (if any) + add on the VPU; whole-tile unmasked vector stores.
    o_ref[...] = x_ref[...].astype(o_ref.dtype) + jnp.asarray(CONST_VALUE, o_ref.dtype)


def _pack_multiple(*dtypes):
    """Sublane packing multiple: 8 for 4-byte, 16 for 2-byte, 32 for 1-byte dtypes.
    Uses the strictest (largest) requirement across the given dtypes."""
    return max(32 // jnp.dtype(d).itemsize for d in dtypes)


def _budget_rows(in_dtype, out_dtype):
    """Largest row-tile (multiple of the packing requirement) whose block stays
    within _BLOCK_BYTES for the wider of the two dtypes."""
    itemsize = max(jnp.dtype(in_dtype).itemsize, jnp.dtype(out_dtype).itemsize)
    pack = _pack_multiple(in_dtype, out_dtype)
    rows = (_BLOCK_BYTES // (_LANES * itemsize)) // pack * pack
    return max(pack, rows)


def constant_model(x, const_dtype=jnp.float32, *, min_pallas_bytes=_SMALL_BYPASS_BYTES):
    """x + const, const = CONST_VALUE cast to const_dtype (ConstantModel.forward).

    Dtype note: with x64 disabled, jnp.promote_types maps 64-bit const dtypes
    to 32-bit, and JAX promotion of a non-weak const can differ from PyTorch's
    0-dim-tensor promotion rules for mixed-width consts.
    """
    out_dtype = jnp.promote_types(x.dtype, jnp.dtype(const_dtype))
    orig_shape = x.shape
    n = x.size

    if n == 0:
        return jnp.zeros(orig_shape, out_dtype)

    # Small-input bypass: custom-call dispatch + pipeline prologue dominate for
    # tiny tensors; a fused XLA add is strictly faster there.
    if x.nbytes < min_pallas_bytes:
        return x.astype(out_dtype) + jnp.asarray(CONST_VALUE, out_dtype)

    budget = _budget_rows(x.dtype, out_dtype)
    compiler_params = pltpu.CompilerParams(dimension_semantics=("parallel",))

    if n % _LANES == 0:
        # Fast path: lane-dense (rows, 128) slab, fixed row tile, cdiv grid.
        rows = n // _LANES
        tr = rows if rows <= budget else budget  # full extent (legal) or packed tile
        x2d = x.reshape(rows, _LANES)
        out2d = pl.pallas_call(
            _add_const_kernel,
            out_shape=jax.ShapeDtypeStruct((rows, _LANES), out_dtype),
            grid=(pl.cdiv(rows, tr),),
            in_specs=[pl.BlockSpec((tr, _LANES), lambda i: (i, 0))],
            out_specs=pl.BlockSpec((tr, _LANES), lambda i: (i, 0)),
            compiler_params=compiler_params,
        )(x2d)
        return out2d.reshape(orig_shape)

    # Ragged path (n not a multiple of 128): tiled 1-D stream with a 128-aligned
    # block size; Pallas masks the partial last block. No full-array VMEM block,
    # so there is no size cliff on large ragged inputs.
    tile_elems = budget * _LANES
    te = n if n <= tile_elems else tile_elems  # full extent for small ragged inputs
    x1d = x.reshape(n)
    out1d = pl.pallas_call(
        _add_const_kernel,
        out_shape=jax.ShapeDtypeStruct((n,), out_dtype),
        grid=(pl.cdiv(n, te),),
        in_specs=[pl.BlockSpec((te,), lambda i: (i,))],
        out_specs=pl.BlockSpec((te,), lambda i: (i,)),
        compiler_params=compiler_params,
    )(x1d)
    return out1d.reshape(orig_shape)


if __name__ == "__main__":
    key = jax.random.PRNGKey(0)

    # Spec shape: (2, 4, 16, 16). Force the Pallas path so the kernel is exercised.
    x = jax.random.normal(key, (2, 4, 16, 16), dtype=jnp.float32)
    ref = x + jnp.asarray(CONST_VALUE, dtype=jnp.float32)
    y = constant_model(x, const_dtype=jnp.float32, min_pallas_bytes=0)
    jax.block_until_ready(y)
    assert y.shape == x.shape and y.dtype == ref.dtype
    assert jnp.allclose(y, ref), "mismatch vs reference (spec shape)"

    # Default (bypass) path on the same small input must match too.
    y_bypass = constant_model(x, const_dtype=jnp.float32)
    jax.block_until_ready(y_bypass)
    assert jnp.allclose(y_bypass, ref), "mismatch vs reference (bypass path)"

    # Larger lane-dense input: exercises the multi-step cdiv grid (rows > budget).
    xl = jax.random.normal(jax.random.PRNGKey(1), (16, 8, 64, 128), dtype=jnp.float32)
    yl = constant_model(xl, const_dtype=jnp.float32)
    jax.block_until_ready(yl)
    assert jnp.allclose(yl, xl + 2.0), "mismatch vs reference (large shape)"

    # Ragged input (size not a multiple of 128): exercises the tiled 1-D path.
    xr = jax.random.normal(jax.random.PRNGKey(2), (3, 5, 7), dtype=jnp.float32)
    yr = constant_model(xr, const_dtype=jnp.float32, min_pallas_bytes=0)
    jax.block_until_ready(yr)
    assert jnp.allclose(yr, xr + 2.0), "mismatch vs reference (ragged shape)"

    print("KERNEL_OK")
</pallas_src>

<mosaic_0001>
module attributes {stable_mosaic.version = 11 : i64} {
  func.func @_add_const_kernel(%arg0: i32, %arg1: memref<16x128xf32, #tpu.memory_space<vmem>>, %arg2: memref<16x128xf32, #tpu.memory_space<vmem>>) attributes {dimension_semantics = [#tpu.dimension_semantics<parallel>], iteration_bounds = array<i64: 1>, scalar_prefetch = 0 : i64, scratch_operands = 0 : i64, tpu.core_type = #tpu.core_type<tc>, window_params = [{transform_indices = @transform_0, window_bounds = array<i64: 16, 128>}, {transform_indices = @transform_1, window_bounds = array<i64: 16, 128>}]} {
    %c0 = arith.constant 0 : index
    %c0_0 = arith.constant 0 : index
    %0 = vector.load %arg1[%c0, %c0_0] : memref<16x128xf32, #tpu.memory_space<vmem>>, vector<16x128xf32>
    %cst = arith.constant 2.000000e+00 : f32
    %1 = vector.broadcast %cst : f32 to vector<16x128xf32>
    %2 = arith.addf %0, %1 : vector<16x128xf32>
    %c0_1 = arith.constant 0 : index
    %c0_2 = arith.constant 0 : index
    %3 = vector.load %arg2[%c0_1, %c0_2] : memref<16x128xf32, #tpu.memory_space<vmem>>, vector<16x128xf32>
    tpu.vector_store %arg2[%c0_1, %c0_2], %2 {strides = array<i32>} : memref<16x128xf32, #tpu.memory_space<vmem>>, vector<16x128xf32>,
    return
  }
  func.func @transform_0(%arg0: i32) -> (i32, i32) {
    %c0_i32 = arith.constant 0 : i32
    %c0_i32_0 = arith.constant 0 : i32
    return %arg0, %c0_i32 : i32, i32
  }
  func.func @transform_1(%arg0: i32) -> (i32, i32) {
    %c0_i32 = arith.constant 0 : i32
    %c0_i32_0 = arith.constant 0 : i32
    return %arg0, %c0_i32 : i32, i32
  }
}

</mosaic_0001>

<llo_original>
// kernel: tpu_custom_call.1
$region0: #{tpu_custom_call.1}
  #allocation0 [shape = 'u32[]', space=smem, size = 0x4, offset = 0x4, fixed_abs, tag = 'smem constant byte address 0x4 - core index']
  #allocation1 [shape = 'u32[144,128]{1,0:T(1,128)}', space=vmem, size = 0x12000, scoped, tag = 'internal scratch']
  %s0 = inlined_call_operand.hbm [shape: f32[16,128], index: 0, kind: input, shape index: {}]
  %s1 = inlined_call_operand.hbm [shape: f32[16,128], index: 1, kind: output, shape index: {}]
  %s2 = sld [smem:[#allocation0]]
  $region18: #{tpu_custom_call.1} parent=0
    _
  %s4 = ssub.s32 1, %s2
  %s5 = scalar_select 0, %s4, %s2
  $region1: #{tpu_custom_call.1} parent=0
    #allocation2 [shape = 'u8[8192]{0}', space=vmem, size = 0x2000, scoped, tag = 'input window, operand 0, single buffered']
    #allocation3 [shape = 's32[1]{0}', space=sflag, size = 0x4, scoped, tag = 'scoped memory for tpu_custom_call.1']
    #allocation4 [shape = 's32[1]{0}', space=sflag, size = 0x4, scoped, tag = 'scoped memory for tpu_custom_call.1']
    #allocation5 [shape = 'u8[8192]{0}', space=vmem, size = 0x2000, scoped, tag = 'output window, operand 0, single buffered']
    %6 = vsyncpa [#allocation3], 0
    %7 = vsyncpa [#allocation4], 0
    // Predicated region
    $region2: #{tpu_custom_call.1} parent=1 // pred_check
      _
    $region3: #{tpu_custom_call.1} parent=1 // pred_check_branch
      %9 = sbr.rel (0) target = $region5
    $region4: #{tpu_custom_call.1} parent=1 // pred_region
      %s11 = ssub.s32 256, 256
      %12 = vsyncadd [#allocation3], %s11
      %s13 = sshll.u32 [#allocation2], 4
      %s14 = int_to_ptr.vmem [resolvable:$true] %s13
      %19 = dma.hbm_to_vmem [thread:$0]  %s0, 256, %s14, [#allocation3], 128, 128, 8
    $region5: #{tpu_custom_call.1} parent=1 // pred_fallthru
      _
    // Predicated region
    $region6: #{tpu_custom_call.1} parent=1 // pred_check
      _
    $region7: #{tpu_custom_call.1} parent=1 // pred_check_branch
      %21 = sbr.rel (0) target = $region9
    $region8: #{tpu_custom_call.1} parent=1 // pred_region
      %22 = dma.done [#allocation3], 256
    $region9: #{tpu_custom_call.1} parent=1 // pred_fallthru
      _
    %v23 = vld [vmem:[#allocation2] sm:$0xff]
    %v24 = vld [vmem:[#allocation2 + $0x8] sm:$0xff]
    %v25 = vadd.f32 %v23, 2.0
    %v26 = vadd.f32 %v24, 2.0
    %27 = vst [vmem:[#allocation5] sm:$0xff] %v25
    %28 = vst [vmem:[#allocation5 + $0x8] sm:$0xff] %v26
    // Predicated region
    $region10: #{tpu_custom_call.1} parent=1 // pred_check
      _
    $region11: #{tpu_custom_call.1} parent=1 // pred_check_branch
      %30 = sbr.rel (0) target = $region13
    $region12: #{tpu_custom_call.1} parent=1 // pred_region
      %s32 = ssub.s32 256, 256
      %33 = vsyncadd [#allocation4], %s32
      %s34 = sshll.u32 [#allocation5], 4
      %s35 = int_to_ptr.vmem [resolvable:$true] %s34
      %40 = dma.vmem_to_hbm [thread:$0]  %s35, 256, %s1, [#allocation4], 128, 128, 8
    $region13: #{tpu_custom_call.1} parent=1 // pred_fallthru
      _
    // Predicated region
    $region14: #{tpu_custom_call.1} parent=1 // pred_check
      _
    $region15: #{tpu_custom_call.1} parent=1 // pred_check_branch
      %42 = sbr.rel (0) target = $region17
    $region16: #{tpu_custom_call.1} parent=1 // pred_region
      %43 = dma.done [#allocation4], 256
    $region17: #{tpu_custom_call.1} parent=1 // pred_fallthru
      _
    %44 = vsyncpa [#allocation3], 1
    %45 = vsyncpa [#allocation4], 1

</llo_original>
